<compile_context>
chip_gen: v7x
topology: tpu7x:2x2x1
jax: 0.10.0
libtpu: 0.0.40
codegen_flags: <defaults>
</compile_context>

<pallas_src>
import jax
import jax.numpy as jnp
from jax.experimental import pallas as pl
from jax.experimental.pallas import tpu as pltpu


def spatial_shortcut_attention_kernel(x_ref, wcat_ref, bst_ref, vst_ref, o_ref):
    # x_ref:   (Bb, N, F*T)  float32   input block, (F,T) flattened onto lanes
    # wcat_ref:(F*T, 2T)     bfloat16  [A | Bmat]: A folds W1 & W2, Bmat folds W3
    # bst_ref: (N, N)        float32   bs_s[0]^T
    # vst_ref: (N, Np)       bfloat16  Vs_s^T, lane-padded to Np (multiple of 128)
    # o_ref:   (Bb, N, Np)   float32   out^T per batch: o[b, k, n] = out[b, n, k]
    Bb, N, FT = x_ref.shape
    T2 = wcat_ref.shape[1]
    T = T2 // 2
    Np = vst_ref.shape[1]
    f32 = jnp.float32
    bf16 = jnp.bfloat16

    # lhs/rhs via one MXU dot: combined[(b,n), :T] = lhs, [:, T:] = rhs_bnt
    x = x_ref[...].astype(bf16).reshape(Bb * N, FT)
    comb = jnp.dot(x, wcat_ref[...], preferred_element_type=f32)   # (Bb*N, 2T)
    lhs = comb[:, :T].reshape(Bb, N, T).astype(bf16)               # (Bb, N, T)
    rhs = comb[:, T:].reshape(Bb, N, T).astype(bf16)               # (Bb, N, T)

    # product^T[b,k,m] = sum_t rhs[b,k,t] * lhs[b,m,t]  (= product[b,m,k])
    prod_t = jnp.einsum('bkt,bmt->bkm', rhs, lhs,
                        preferred_element_type=f32)                # (Bb, N, N)
    p_t = jax.nn.sigmoid(prod_t + bst_ref[...][None])              # sigmoid(product+bs)^T, f32

    # SS^T[b,k,n] = sum_m sigmoid(...)[b,m,k] * Vs[n,m] = p_t[b,k,:] @ Vs^T
    ss_t = jnp.dot(p_t.astype(bf16).reshape(Bb * N, N), vst_ref[...],
                   preferred_element_type=f32)                     # (Bb*N, Np)

    # softmax(1 - SS, dim=1) == lane-axis softmax of (1 - SS^T) rows (pad lanes masked)
    z = 1.0 - ss_t
    lane = jax.lax.broadcasted_iota(jnp.int32, z.shape, 1)
    z = jnp.where(lane < N, z, -jnp.inf)
    z = z - jnp.max(z, axis=-1, keepdims=True)
    e = jnp.exp(z)
    denom = jnp.sum(e, axis=-1, keepdims=True)
    att_t = e * pl.reciprocal(denom, approx=True)                  # (Bb*N, Np)

    o_ref[...] = att_t.reshape(Bb, N, Np)


def _pick_batch_block(B, max_block=4):
    """Batch block: capped at 4 (v7x 64 MiB VMEM safe), >=2 grid steps when possible."""
    if B <= 1:
        return 1
    bb = max(1, min(max_block, B // 2))
    while B % bb:
        bb -= 1
    return bb


def spatial_shortcut_attention(x, params, *, block_b=None):
    """x: (B, N, F_in, T) float32. Returns (B, N, N) non-causal attention."""
    B, N, F, T = x.shape
    FT = F * T
    bb = _pick_batch_block(B) if block_b is None else block_b
    assert B % bb == 0, (B, bb)
    Np = ((N + 127) // 128) * 128          # lane-dense (padded) output width

    # --- wrapper-side parameter folding (cheap XLA work, done once per call) ---
    # x flattened lane-dense (pure reshape, no transpose)
    x_flat = x.reshape(B, N, FT).astype(jnp.float32)
    W1 = params["W1_s"].astype(jnp.float32)        # (T,)
    W2 = params["W2_s"].astype(jnp.float32)        # (F, T)
    W3 = params["W3_s"].astype(jnp.float32)        # (F,)
    # A[f*T+t, t'] = W1[t] * W2[f, t']   ->  lhs = x_flat @ A
    A = (W1[None, :, None] * W2[:, None, :]).reshape(FT, T)
    # Bm[f*T+t, t'] = W3[f] * (t == t')  ->  rhs_bnt = x_flat @ Bm
    Bm = (W3[:, None, None] * jnp.eye(T, dtype=jnp.float32)[None, :, :]).reshape(FT, T)
    w_cat = jnp.concatenate([A, Bm], axis=1).astype(jnp.bfloat16)  # (FT, 2T)

    bs_t = jnp.transpose(params["bs_s"][0]).astype(jnp.float32)    # (N, N) = bs_s^T
    vs_t = jnp.transpose(params["Vs_s"]).astype(jnp.bfloat16)      # (N, N) = Vs_s^T
    vs_t_pad = jnp.pad(vs_t, ((0, 0), (0, Np - N)))                # (N, Np), zero pad lanes

    out_t = pl.pallas_call(
        spatial_shortcut_attention_kernel,
        out_shape=jax.ShapeDtypeStruct((B, N, Np), jnp.float32),
        grid=(B // bb,),
        in_specs=[
            pl.BlockSpec((bb, N, FT), lambda i: (i, 0, 0)),
            pl.BlockSpec((FT, 2 * T), lambda i: (0, 0)),
            pl.BlockSpec((N, N), lambda i: (0, 0)),
            pl.BlockSpec((N, Np), lambda i: (0, 0)),
        ],
        out_specs=pl.BlockSpec((bb, N, Np), lambda i: (i, 0, 0)),
        compiler_params=pltpu.CompilerParams(
            dimension_semantics=("parallel",),
            vmem_limit_bytes=48 * 1024 * 1024,
        ),
    )(x_flat, w_cat, bs_t, vs_t_pad)

    # Kernel produced out^T[b,k,n] (lane-padded); module returns out[b,n,k].
    # TODO(synk): skip this transpose if the downstream consumer can take out^T.
    return jnp.swapaxes(out_t[..., :N], 1, 2)


def init_params(key, *, N, F, T):
    """Deterministic init (the PyTorch parameters are uninitialized tensors)."""
    ks = jax.random.split(key, 5)
    s = 0.1
    return dict(
        W1_s=jax.random.normal(ks[0], (T,), jnp.float32) * s,
        W2_s=jax.random.normal(ks[1], (F, T), jnp.float32) * s,
        W3_s=jax.random.normal(ks[2], (F,), jnp.float32) * s,
        bs_s=jax.random.normal(ks[3], (1, N, N), jnp.float32) * s,
        Vs_s=jax.random.normal(ks[4], (N, N), jnp.float32) * s,
    )


def reference(x, p):
    """Plain-JAX mirror of the PyTorch forward pass (for verification)."""
    lhs = jnp.matmul(jnp.einsum('bnft,t->bnf', x, p["W1_s"]), p["W2_s"])   # (B,N,T)
    rhs = jnp.swapaxes(jnp.einsum('f,bnft->bnt', p["W3_s"], x), -1, -2)    # (B,T,N)
    product = jnp.matmul(lhs, rhs)                                         # (B,N,N)
    SS = jnp.matmul(p["Vs_s"], jax.nn.sigmoid(product + p["bs_s"]))        # (B,N,N)
    return jax.nn.softmax(1.0 - SS, axis=1)


if __name__ == "__main__":
    # Small shapes consistent with the module: x = (B, N, F_in, T)
    B, N, F, T = 2, 16, 4, 8

    key = jax.random.PRNGKey(0)
    kx, kp = jax.random.split(key)
    x = jax.random.normal(kx, (B, N, F, T), jnp.float32)
    params = init_params(kp, N=N, F=F, T=T)

    out = spatial_shortcut_attention(x, params)
    out = jax.block_until_ready(out)

    ref = reference(x, params)
    assert out.shape == (B, N, N), out.shape
    assert bool(jnp.all(jnp.isfinite(out)))
    max_err = float(jnp.max(jnp.abs(out - ref)))
    assert max_err < 5e-3, f"max abs err vs reference: {max_err}"
    # softmax over dim=1 -> columns sum to 1
    col_err = float(jnp.max(jnp.abs(jnp.sum(out, axis=1) - 1.0)))
    assert col_err < 5e-3, f"softmax column-sum error: {col_err}"

    print("KERNEL_OK")
</pallas_src>

<mosaic_0001>
module attributes {stable_mosaic.version = 11 : i64} {
  func.func @spatial_shortcut_attention_kernel(%arg0: i32, %arg1: memref<1x16x32xf32, #tpu.memory_space<vmem>>, %arg2: memref<32x16xbf16, #tpu.memory_space<vmem>>, %arg3: memref<16x16xf32, #tpu.memory_space<vmem>>, %arg4: memref<16x128xbf16, #tpu.memory_space<vmem>>, %arg5: memref<1x16x128xf32, #tpu.memory_space<vmem>>) attributes {dimension_semantics = [#tpu.dimension_semantics<parallel>], iteration_bounds = array<i64: 2>, scalar_prefetch = 0 : i64, scratch_operands = 0 : i64, tpu.core_type = #tpu.core_type<tc>, window_params = [{transform_indices = @transform_0, window_bounds = array<i64: 1, 16, 32>}, {pipeline_mode = #tpu.pipeline_mode<synchronous>, transform_indices = @transform_1, window_bounds = array<i64: 32, 16>}, {pipeline_mode = #tpu.pipeline_mode<synchronous>, transform_indices = @transform_2, window_bounds = array<i64: 16, 16>}, {pipeline_mode = #tpu.pipeline_mode<synchronous>, transform_indices = @transform_3, window_bounds = array<i64: 16, 128>}, {transform_indices = @transform_4, window_bounds = array<i64: 1, 16, 128>}]} {
    %c0 = arith.constant 0 : index
    %c0_0 = arith.constant 0 : index
    %c0_1 = arith.constant 0 : index
    %0 = vector.load %arg1[%c0, %c0_0, %c0_1] : memref<1x16x32xf32, #tpu.memory_space<vmem>>, vector<1x16x32xf32>
    %1 = arith.truncf %0 : vector<1x16x32xf32> to vector<1x16x32xbf16>
    %2 = vector.shape_cast %1 : vector<1x16x32xbf16> to vector<16x32xbf16>
    %c0_2 = arith.constant 0 : index
    %c0_3 = arith.constant 0 : index
    %3 = vector.load %arg2[%c0_2, %c0_3] : memref<32x16xbf16, #tpu.memory_space<vmem>>, vector<32x16xbf16>
    %cst = arith.constant dense<0.000000e+00> : vector<16x16xf32>
    %4 = tpu.matmul %2, %3, %cst {dimension_numbers = #tpu.dot_dimension_numbers<[1], [0], [0], [1], [0, 0, 1, 1], [], []>} : vector<16x32xbf16>, vector<32x16xbf16>, vector<16x16xf32> -> vector<16x16xf32>
    %5 = vector.extract_strided_slice %4 {offsets = [0, 0], sizes = [16, 8], strides = [1, 1]} : vector<16x16xf32> to vector<16x8xf32>
    %6 = vector.shape_cast %5 : vector<16x8xf32> to vector<1x16x8xf32>
    %7 = arith.truncf %6 : vector<1x16x8xf32> to vector<1x16x8xbf16>
    %8 = vector.extract_strided_slice %4 {offsets = [0, 8], sizes = [16, 8], strides = [1, 1]} : vector<16x16xf32> to vector<16x8xf32>
    %9 = vector.shape_cast %8 : vector<16x8xf32> to vector<1x16x8xf32>
    %10 = arith.truncf %9 : vector<1x16x8xf32> to vector<1x16x8xbf16>
    "tpu.trace_start"() <{level = 10 : i32, message = "bkt,bmt->bkm"}> : () -> ()
    %cst_4 = arith.constant dense<0.000000e+00> : vector<1x16x16xf32>
    %11 = tpu.matmul %10, %7, %cst_4 {dimension_numbers = #tpu.dot_dimension_numbers<[2], [2], [1], [1], [0, 0, 0, 1, 1, 1], [0], [0]>} : vector<1x16x8xbf16>, vector<1x16x8xbf16>, vector<1x16x16xf32> -> vector<1x16x16xf32>
    "tpu.trace_stop"() : () -> ()
    %c0_5 = arith.constant 0 : index
    %c0_6 = arith.constant 0 : index
    %12 = vector.load %arg3[%c0_5, %c0_6] : memref<16x16xf32, #tpu.memory_space<vmem>>, vector<16x16xf32>
    %13 = vector.shape_cast %12 : vector<16x16xf32> to vector<1x16x16xf32>
    %14 = arith.addf %11, %13 : vector<1x16x16xf32>
    %15 = arith.negf %14 : vector<1x16x16xf32>
    %16 = math.exp %15 : vector<1x16x16xf32>
    %cst_7 = arith.constant 1.000000e+00 : f32
    %17 = vector.broadcast %cst_7 : f32 to vector<1x16x16xf32>
    %18 = arith.addf %17, %16 : vector<1x16x16xf32>
    %19 = arith.divf %17, %18 : vector<1x16x16xf32>
    %20 = arith.truncf %19 : vector<1x16x16xf32> to vector<1x16x16xbf16>
    %21 = vector.shape_cast %20 : vector<1x16x16xbf16> to vector<16x16xbf16>
    %c0_8 = arith.constant 0 : index
    %c0_9 = arith.constant 0 : index
    %22 = vector.load %arg4[%c0_8, %c0_9] : memref<16x128xbf16, #tpu.memory_space<vmem>>, vector<16x128xbf16>
    %cst_10 = arith.constant dense<0.000000e+00> : vector<16x128xf32>
    %23 = tpu.matmul %21, %22, %cst_10 {dimension_numbers = #tpu.dot_dimension_numbers<[1], [0], [0], [1], [0, 0, 1, 1], [], []>} : vector<16x16xbf16>, vector<16x128xbf16>, vector<16x128xf32> -> vector<16x128xf32>
    %cst_11 = arith.constant 1.000000e+00 : f32
    %24 = vector.broadcast %cst_11 : f32 to vector<16x128xf32>
    %25 = arith.subf %24, %23 : vector<16x128xf32>
    %26 = tpu.iota {dimensions = array<i32: 1>} : vector<16x128xi32>
    %c16_i32 = arith.constant 16 : i32
    %27 = vector.broadcast %c16_i32 : i32 to vector<16x128xi32>
    %28 = arith.cmpi slt, %26, %27 : vector<16x128xi32>
    %cst_12 = arith.constant 0xFF800000 : f32
    %29 = vector.broadcast %cst_12 : f32 to vector<16x128xf32>
    %30 = arith.select %28, %25, %29 : vector<16x128xi1>, vector<16x128xf32>
    %cst_13 = arith.constant dense<0xFF800000> : vector<16xf32>
    %31 = vector.multi_reduction <maximumf>, %30, %cst_13 [1] : vector<16x128xf32> to vector<16xf32>
    %32 = vector.shape_cast %31 : vector<16xf32> to vector<16x1xf32>
    %33 = vector.broadcast %32 : vector<16x1xf32> to vector<16x128xf32>
    %34 = arith.subf %30, %33 : vector<16x128xf32>
    %35 = math.exp %34 : vector<16x128xf32>
    %cst_14 = arith.constant dense<0.000000e+00> : vector<16xf32>
    %36 = vector.multi_reduction <add>, %35, %cst_14 [1] : vector<16x128xf32> to vector<16xf32>
    %37 = vector.shape_cast %36 : vector<16xf32> to vector<16x1xf32>
    %38 = tpu.reciprocal %37 {approx = true} : vector<16x1xf32> -> vector<16x1xf32>
    %39 = vector.broadcast %38 : vector<16x1xf32> to vector<16x128xf32>
    %40 = arith.mulf %35, %39 : vector<16x128xf32>
    %41 = vector.shape_cast %40 : vector<16x128xf32> to vector<1x16x128xf32>
    %c0_15 = arith.constant 0 : index
    %c0_16 = arith.constant 0 : index
    %c0_17 = arith.constant 0 : index
    %42 = vector.load %arg5[%c0_15, %c0_16, %c0_17] : memref<1x16x128xf32, #tpu.memory_space<vmem>>, vector<1x16x128xf32>
    tpu.vector_store %arg5[%c0_15, %c0_16, %c0_17], %41 {strides = array<i32>} : memref<1x16x128xf32, #tpu.memory_space<vmem>>, vector<1x16x128xf32>,
    return
  }
  func.func @transform_0(%arg0: i32) -> (i32, i32, i32) {
    %c0_i32 = arith.constant 0 : i32
    %c0_i32_0 = arith.constant 0 : i32
    %c0_i32_1 = arith.constant 0 : i32
    return %arg0, %c0_i32, %c0_i32_0 : i32, i32, i32
  }
  func.func @transform_1(%arg0: i32) -> (i32, i32) {
    %c0_i32 = arith.constant 0 : i32
    %c0_i32_0 = arith.constant 0 : i32
    %c0_i32_1 = arith.constant 0 : i32
    return %c0_i32, %c0_i32_0 : i32, i32
  }
  func.func @transform_2(%arg0: i32) -> (i32, i32) {
    %c0_i32 = arith.constant 0 : i32
    %c0_i32_0 = arith.constant 0 : i32
    %c0_i32_1 = arith.constant 0 : i32
    return %c0_i32, %c0_i32_0 : i32, i32
  }
  func.func @transform_3(%arg0: i32) -> (i32, i32) {
    %c0_i32 = arith.constant 0 : i32
    %c0_i32_0 = arith.constant 0 : i32
    %c0_i32_1 = arith.constant 0 : i32
    return %c0_i32, %c0_i32_0 : i32, i32
  }
  func.func @transform_4(%arg0: i32) -> (i32, i32, i32) {
    %c0_i32 = arith.constant 0 : i32
    %c0_i32_0 = arith.constant 0 : i32
    %c0_i32_1 = arith.constant 0 : i32
    return %arg0, %c0_i32, %c0_i32_0 : i32, i32, i32
  }
}

</mosaic_0001>

<llo_original>
// kernel: tpu_custom_call.1
$region0: #{tpu_custom_call.1}
  #allocation0 [shape = 'u32[]', space=smem, size = 0x4, offset = 0x4, fixed_abs, tag = 'smem constant byte address 0x4 - core index']
  #allocation1 [shape = 'u32[144,128]{1,0:T(1,128)}', space=vmem, size = 0x12000, scoped, tag = 'internal scratch']
  %s0 = inlined_call_operand.hbm [shape: f32[2,16,32], index: 0, kind: input, shape index: {}]
  %s1 = inlined_call_operand.vmem [shape: bf16[32,16], index: 1, kind: input, shape index: {}]
  %s2 = inlined_call_operand.vmem [shape: f32[16,16], index: 2, kind: input, shape index: {}]
  %s3 = inlined_call_operand.vmem [shape: bf16[16,128], index: 3, kind: input, shape index: {}]
  %s4 = inlined_call_operand.hbm [shape: f32[2,16,128], index: 4, kind: output, shape index: {}]
  %s5 = sld [smem:[#allocation0]]
  $region53: #{tpu_custom_call.1} parent=0
    _
  %s7 = ssub.s32 1, %s5
  %s8 = scalar_select 0, %s7, %s5
  $region1: #{tpu_custom_call.1} parent=0
    #allocation2 [shape = 'u8[16384]{0}', space=vmem, size = 0x4000, scoped, tag = 'input window, operand 0']
    #allocation3 [shape = 's32[2]{0}', space=sflag, size = 0x8, scoped, tag = 'scoped memory for tpu_custom_call.1']
    #allocation4 [shape = 's32[2]{0}', space=sflag, size = 0x8, scoped, tag = 'scoped memory for tpu_custom_call.1']
    #allocation5 [shape = 'u8[16384]{0}', space=vmem, size = 0x4000, scoped, tag = 'output window, operand 0']
    %9 = vsyncpa [#allocation3], 0
    %s10 = scalar_lea.sflag [#allocation3], 1
    %11 = vsyncpa %s10, 0
    %12 = vsyncpa [#allocation4], 0
    %s13 = scalar_lea.sflag [#allocation4], 1
    %14 = vsyncpa %s13, 0
    loop: start=0, step=1, limit=4
    $region2: #{tpu_custom_call.1} parent=1 // loop_pre_header
      _
    $region3: #{tpu_custom_call.1} parent=1 // loop_header
      %s16 = sphi 0, %s20
      %p17 = scmp.ge.s32.totalorder %s16, 4
      %s26 = sphi 0, %s28
      %s29 = sphi 0, %s26
      %s30 = sphi 0, %s29
      %s46 = sphi 0, %s30
      %s50 = sphi 0, %s50
      %s52 = sphi 0, %s50
      %s53 = sphi 0, %s52
      %s67 = sphi 0, %s53
      %s71 = sphi 0, %s71
      %s73 = sphi 0, %s71
      %s74 = sphi 0, %s73
      %s88 = sphi 0, %s74
      %s92 = sphi 0, %s92
      %s94 = sphi 0, %s92
      %s95 = sphi 0, %s94
      %s109 = sphi 0, %s95
      %s115 = sphi 0, %s117
      %s118 = sphi 0, %s115
      %s119 = sphi 0, %s118
      %s135 = sphi 0, %s119
    $region4: #{tpu_custom_call.1} parent=1 // loop_header_branch
      %19 = sbr.rel (%p17) target = $region8
    $region5: #{tpu_custom_call.1} parent=1 // loop_body
      %s21 = ssub.s32 %s16, 1
      %s22 = ssub.s32 %s16, 2
      %s23 = sadd.s32 %s16, 1
      %s24 = ssub.s32 %s16, %s23
      %p25 = scmp.eq.s32.totalorder %s24, 0
      %s27 = sadd.s32 %s26, 1
      %s28 = scalar_select %p25, %s26, %s27
      %p31 = pneg %p25
      %p32 = scmp.eq.s32.totalorder %s16, 1
      %p33 = por %p31, %p32
      %p34 = scmp.ne.s32.totalorder %s26, %s29
      %p35 = scmp.eq.s32.totalorder %s16, 0
      %p36 = por %p34, %p35
      %p37 = scmp.ne.s32.totalorder %s26, %s29
      %p38 = scmp.eq.s32.totalorder %s21, 1
      %p39 = por %p37, %p38
      %p40 = scmp.ne.s32.totalorder %s29, %s30
      %p41 = scmp.eq.s32.totalorder %s21, 0
      %p42 = por %p40, %p41
      %p43 = scmp.ne.s32.totalorder %s29, %s30
      %p44 = scmp.eq.s32.totalorder %s22, 1
      %p45 = por %p43, %p44
      %p47 = scmp.ne.s32.totalorder %s30, %s46
      %p48 = scmp.eq.s32.totalorder %s22, 0
      %p49 = por %p47, %p48
      %s51 = sadd.s32 %s50, 1
      %p54 = scmp.eq.s32.totalorder %s16, 1
      %p55 = scmp.ne.s32.totalorder %s50, %s52
      %p56 = scmp.eq.s32.totalorder %s16, 0
      %p57 = por %p55, %p56
      %p58 = scmp.ne.s32.totalorder %s50, %s52
      %p59 = scmp.eq.s32.totalorder %s21, 1
      %p60 = por %p58, %p59
      %p61 = scmp.ne.s32.totalorder %s52, %s53
      %p62 = scmp.eq.s32.totalorder %s21, 0
      %p63 = por %p61, %p62
      %p64 = scmp.ne.s32.totalorder %s52, %s53
      %p65 = scmp.eq.s32.totalorder %s22, 1
      %p66 = por %p64, %p65
      %p68 = scmp.ne.s32.totalorder %s53, %s67
      %p69 = scmp.eq.s32.totalorder %s22, 0
      %p70 = por %p68, %p69
      %s72 = sadd.s32 %s71, 1
      %p75 = scmp.eq.s32.totalorder %s16, 1
      %p76 = scmp.ne.s32.totalorder %s71, %s73
      %p77 = scmp.eq.s32.totalorder %s16, 0
      %p78 = por %p76, %p77
      %p79 = scmp.ne.s32.totalorder %s71, %s73
      %p80 = scmp.eq.s32.totalorder %s21, 1
      %p81 = por %p79, %p80
      %p82 = scmp.ne.s32.totalorder %s73, %s74
      %p83 = scmp.eq.s32.totalorder %s21, 0
      %p84 = por %p82, %p83
      %p85 = scmp.ne.s32.totalorder %s73, %s74
      %p86 = scmp.eq.s32.totalorder %s22, 1
      %p87 = por %p85, %p86
      %p89 = scmp.ne.s32.totalorder %s74, %s88
      %p90 = scmp.eq.s32.totalorder %s22, 0
      %p91 = por %p89, %p90
      %s93 = sadd.s32 %s92, 1
      %p96 = scmp.eq.s32.totalorder %s16, 1
      %p97 = scmp.ne.s32.totalorder %s92, %s94
      %p98 = scmp.eq.s32.totalorder %s16, 0
      %p99 = por %p97, %p98
      %p100 = scmp.ne.s32.totalorder %s92, %s94
      %p101 = scmp.eq.s32.totalorder %s21, 1
      %p102 = por %p100, %p101
      %p103 = scmp.ne.s32.totalorder %s94, %s95
      %p104 = scmp.eq.s32.totalorder %s21, 0
      %p105 = por %p103, %p104
      %p106 = scmp.ne.s32.totalorder %s94, %s95
      %p107 = scmp.eq.s32.totalorder %s22, 1
      %p108 = por %p106, %p107
      %p110 = scmp.ne.s32.totalorder %s95, %s109
      %p111 = scmp.eq.s32.totalorder %s22, 0
      %p112 = por %p110, %p111
      %s113 = ssub.s32 %s16, %s23
      %p114 = scmp.eq.s32.totalorder %s113, 0
      %s116 = sadd.s32 %s115, 1
      %s117 = scalar_select %p114, %s115, %s116
      %p120 = pneg %p114
      %p121 = scmp.eq.s32.totalorder %s16, 1
      %p122 = por %p120, %p121
      %p123 = scmp.ne.s32.totalorder %s115, %s118
      %p124 = scmp.eq.s32.totalorder %s16, 0
      %p125 = por %p123, %p124
      %p126 = scmp.ne.s32.totalorder %s115, %s118
      %p127 = scmp.eq.s32.totalorder %s21, 1
      %p128 = por %p126, %p127
      %p129 = scmp.ne.s32.totalorder %s118, %s119
      %p130 = scmp.eq.s32.totalorder %s21, 0
      %p131 = por %p129, %p130
      %p132 = scmp.ne.s32.totalorder %s118, %s119
      %p133 = scmp.eq.s32.totalorder %s22, 1
      %p134 = por %p132, %p133
      %p136 = scmp.ne.s32.totalorder %s119, %s135
      %p137 = scmp.eq.s32.totalorder %s22, 0
      %p138 = por %p136, %p137
      %p139 = scmp.le.s32.totalorder 1, %s16
      %p140 = scmp.lt.s32.totalorder %s16, 3
      %p141 = pnand %p139, %p140
      %p142 = pneg %p141
      // Predicated region
      $region9: #{tpu_custom_call.1} parent=5 // pred_check
        _
      $region10: #{tpu_custom_call.1} parent=5 // pred_check_branch
        %144 = sbr.rel (%p141) target = $region12
      $region11: #{tpu_custom_call.1} parent=5 // pred_region
        %s145 = ssub.s32 %s16, 1
        // Predicated region
        $region13: #{tpu_custom_call.1} parent=11 // pred_check
          %p146 = pneg %p63
        $region14: #{tpu_custom_call.1} parent=11 // pred_check_branch
          %148 = sbr.rel (%p146) target = $region16
        $region15: #{tpu_custom_call.1} parent=11 // pred_region
          _
        $region16: #{tpu_custom_call.1} parent=11 // pred_fallthru
          _
        // Predicated region
        $region17: #{tpu_custom_call.1} parent=11 // pred_check
          %p149 = pneg %p84
        $region18: #{tpu_custom_call.1} parent=11 // pred_check_branch
          %151 = sbr.rel (%p149) target = $region20
        $region19: #{tpu_custom_call.1} parent=11 // pred_region
          _
        $region20: #{tpu_custom_call.1} parent=11 // pred_fallthru
          _
        // Predicated region
        $region21: #{tpu_custom_call.1} parent=11 // pred_check
          %p152 = pneg %p105
        $region22: #{tpu_custom_call.1} parent=11 // pred_check_branch
          %154 = sbr.rel (%p152) target = $region24
        $region23: #{tpu_custom_call.1} parent=11 // pred_region
          _
        $region24: #{tpu_custom_call.1} parent=11 // pred_fallthru
          _
      $region12: #{tpu_custom_call.1} parent=5 // pred_fallthru
        _
      %p155 = scmp.lt.s32.totalorder %s16, 2
      // Predicated region
      $region25: #{tpu_custom_call.1} parent=5 // pred_check
        %p156 = pneg %p155
      $region26: #{tpu_custom_call.1} parent=5 // pred_check_branch
        %158 = sbr.rel (%p156) target = $region28
      $region27: #{tpu_custom_call.1} parent=5 // pred_region
        // Predicated region
        $region29: #{tpu_custom_call.1} parent=27 // pred_check
          %p159 = pneg %p36
        $region30: #{tpu_custom_call.1} parent=27 // pred_check_branch
          %161 = sbr.rel (%p159) target = $region32
        $region31: #{tpu_custom_call.1} parent=27 // pred_region
          %s162 = sand.u32 %s26, 1
          %s163 = scalar_lea.sflag [#allocation3], %s162
          %s164 = sand.u32 %s26, 1
          %s165 = smul.addr %s164, 16
          %s166 = scalar_lea.vmem [#allocation2], %s165
          %s168 = ssub.s32 256, 256
          %169 = vsyncadd %s163, %s168
          %s170 = smul.addr %s16, 2
          %s171 = smul.addr %s170, 128
          %s172 = scalar_lea.hbm %s0, %s171
          %s173 = sshll.u32 %s166, 4
          %s174 = int_to_ptr.vmem [resolvable:$true] %s173
          %179 = dma.hbm_to_vmem [thread:$0]  %s172, 256, %s174, %s163, 128, 128, 8
        $region32: #{tpu_custom_call.1} parent=27 // pred_fallthru
          _
      $region28: #{tpu_custom_call.1} parent=5 // pred_fallthru
        _
      %p180 = scmp.le.s32.totalorder 1, %s16
      %p181 = scmp.lt.s32.totalorder %s16, 3
      %p182 = pnand %p180, %p181
      %p183 = pneg %p182
      // Predicated region
      $region33: #{tpu_custom_call.1} parent=5 // pred_check
        _
      $region34: #{tpu_custom_call.1} parent=5 // pred_check_branch
        %185 = sbr.rel (%p182) target = $region36
      $region35: #{tpu_custom_call.1} parent=5 // pred_region
        %s186 = ssub.s32 %s16, 1
        %s187 = sand.u32 %s29, 1
        %s188 = scalar_lea.sflag [#allocation3], %s187
        %s189 = sand.u32 %s29, 1
        %s190 = smul.addr %s189, 16
        %s191 = scalar_lea.vmem [#allocation2], %s190
        // Predicated region
        $region37: #{tpu_custom_call.1} parent=35 // pred_check
          %p192 = pneg %p42
        $region38: #{tpu_custom_call.1} parent=35 // pred_check_branch
          %194 = sbr.rel (%p192) target = $region40
        $region39: #{tpu_custom_call.1} parent=35 // pred_region
          %195 = dma.done %s188, 256
        $region40: #{tpu_custom_call.1} parent=35 // pred_fallthru
          _
        %s196 = sand.u32 %s29, 1
        %s197 = scalar_lea.sflag [#allocation3], %s196
        %s198 = sand.u32 %s29, 1
        %s199 = smul.addr %s198, 16
        %s200 = scalar_lea.vmem [#allocation2], %s199
        %p201 = pneg %p42
        %p202 = pneg %p39
        %p203 = pneg %p63
        %p204 = pneg %p60
        %p205 = pneg %p84
        %p206 = pneg %p81
        %p207 = pneg %p105
        %p208 = pneg %p102
        %p209 = pneg %p131
        %p210 = pneg %p128
        %s211 = sand.u32 %s118, 1
        %s212 = scalar_lea.sflag [#allocation4], %s211
        %s213 = sand.u32 %s118, 1
        %s214 = smul.addr %s213, 16
        %s215 = scalar_lea.vmem [#allocation5], %s214
        %v217 = vld [vmem:[%s191] sm:$0xff]
        %v218 = vld [vmem:[%s191 + $0x8] sm:$0xff]
        %v219 = vpack.c.bf16 %v218, %v217
        %v220 = vld [vmem:[%s1] sm:$0xf]
        %v221 = vld [vmem:[%s1 + $0x4] sm:$0xf]
        %v222 = vld [vmem:[%s1 + $0x8] sm:$0xf]
        %v223 = vld [vmem:[%s1 + $0xc] sm:$0xf]
        %v228 = vunpack.c.l.b16 %v220
        %v229 = vunpack.c.l.b16 %v221
        %v230 = vunpack.c.l.b16 %v222
        %v231 = vunpack.c.l.b16 %v223
        %v232 = vpack.c.b16 %v229, %v228
        %v233 = vpack.c.b16 %v231, %v230
        %vm236 = vcmask 261120
        %v238 = vsel %vm236, %v219, 0
        %240 = vmatprep.subr.bf16.mxu0 0
        %241 = vmatpush1.bf16.msra.mxu0 %v232
        %242 = vmatprep.subr.bf16.mxu0 0
        %243 = vmatpush1.bf16.msra.mxu0 %v233
        %244 = vmatprep.subr.bf16.mxu0 0
        %245 = vmatpush1.bf16.msra.mxu0 0
        %246 = vmatprep.subr.bf16.mxu0 0
        %247 = vmatpush1.bf16.msra.mxu0 0
        %248 = vmatprep.subr.bf16.mxu0 0
        %249 = vmatpush1.bf16.msra.mxu0 0
        %250 = vmatprep.subr.bf16.mxu0 0
        %251 = vmatpush1.bf16.msra.mxu0 0
        %252 = vmatprep.subr.bf16.mxu0 0
        %253 = vmatpush1.bf16.msra.mxu0 0
        %254 = vmatprep.subr.bf16.mxu0 0
        %255 = vmatpush1.bf16.msra.mxu0 0
        %256 = vmatprep.subr.bf16.mxu0 0
        %257 = vmatpush1.bf16.msra.mxu0 0
        %258 = vmatprep.subr.bf16.mxu0 0
        %259 = vmatpush1.bf16.msra.mxu0 0
        %260 = vmatprep.subr.bf16.mxu0 0
        %261 = vmatpush1.bf16.msra.mxu0 0
        %262 = vmatprep.subr.bf16.mxu0 0
        %263 = vmatpush1.bf16.msra.mxu0 0
        %264 = vmatprep.subr.bf16.mxu0 0
        %265 = vmatpush1.bf16.msra.mxu0 0
        %266 = vmatprep.subr.bf16.mxu0 0
        %267 = vmatpush1.bf16.msra.mxu0 0
        %268 = vmatprep.subr.bf16.mxu0 0
        %269 = vmatpush1.bf16.msra.mxu0 0
        %270 = vmatprep.subr.bf16.mxu0 0
        %271 = vmatpush1.bf16.msra.mxu0 0
        %272 = vmatprep.mubr.bf16.mxu0 0
        %273 = vmatmul.mubr.bf16.gmra.mrb[0].mxu0 %v238
        %v274 = vpop.f32.mrb[0].mxu0
        %v275 = vadd.f32 0.0, %v274
        %v276 = vpop.f32.mrb[0].mxu0
        %v277 = vpop.f32.mrb[0].mxu0
        %v278 = vadd.f32 0.0, %v277
        %v279 = vpop.f32.mrb[0].mxu0
        %280 = vdwg.mxu0
        %v281 = vpack.c.bf16 %v278, %v275
        %v282 = vld [vmem:[%s2] sm:$0xff]
        %v283 = vld [vmem:[%s2 + $0x8] sm:$0xff]
        %285 = vrot.lane.b32.xlu0 %v281, 120
        %v286 = vpop.permute.xlu0 %285
        %vm287 = vcmask 64512
        %v289 = vsel %vm287, %v286, 0
        %v292 = vsel %vm287, %v281, 0
        %294 = vmatprep.subr.bf16.mxu0 0
        %295 = vmatpush1.bf16.xpose.msra.mxu0 %v292
        %296 = vmatprep.subr.bf16.mxu0 0
        %297 = vmatpush1.bf16.xpose.msra.mxu0 0
        %298 = vmatprep.subr.bf16.mxu0 0
        %299 = vmatpush1.bf16.xpose.msra.mxu0 0
        %300 = vmatprep.subr.bf16.mxu0 0
        %301 = vmatpush1.bf16.xpose.msra.mxu0 0
        %302 = vmatprep.subr.bf16.mxu0 0
        %303 = vmatpush1.bf16.xpose.msra.mxu0 0
        %304 = vmatprep.subr.bf16.mxu0 0
        %305 = vmatpush1.bf16.xpose.msra.mxu0 0
        %306 = vmatprep.subr.bf16.mxu0 0
        %307 = vmatpush1.bf16.xpose.msra.mxu0 0
        %308 = vmatprep.subr.bf16.mxu0 0
        %309 = vmatpush1.bf16.xpose.msra.mxu0 0
        %310 = vmatprep.subr.bf16.mxu0 0
        %311 = vmatpush1.bf16.xpose.msra.mxu0 0
        %312 = vmatprep.subr.bf16.mxu0 0
        %313 = vmatpush1.bf16.xpose.msra.mxu0 0
        %314 = vmatprep.subr.bf16.mxu0 0
        %315 = vmatpush1.bf16.xpose.msra.mxu0 0
        %316 = vmatprep.subr.bf16.mxu0 0
        %317 = vmatpush1.bf16.xpose.msra.mxu0 0
        %318 = vmatprep.subr.bf16.mxu0 0
        %319 = vmatpush1.bf16.xpose.msra.mxu0 0
        %320 = vmatprep.subr.bf16.mxu0 0
        %321 = vmatpush1.bf16.xpose.msra.mxu0 0
        %322 = vmatprep.subr.bf16.mxu0 0
        %323 = vmatpush1.bf16.xpose.msra.mxu0 0
        %324 = vmatprep.subr.bf16.mxu0 0
        %325 = vmatpush1.bf16.xpose.msra.mxu0 0
        %326 = vmatprep.mubr.bf16.mxu0 0
        %327 = vmatmul.mubr.bf16.gmra.mrb[0].mxu0 %v289
        %v328 = vpop.f32.mrb[0].mxu0
        %v329 = vadd.f32 %v282, %v328
        %v330 = vpop.f32.mrb[0].mxu0
        %v331 = vpop.f32.mrb[0].mxu0
        %v332 = vadd.f32 %v283, %v331
        %v333 = vpop.f32.mrb[0].mxu0
        %334 = vdwg.mxu0
        %v335 = vxor.u32 %v329, 2147483648
        %v336 = vxor.u32 %v332, 2147483648
        %v337 = vmul.f32 %v335, 1.442695
        %v338 = vpow.pop %v337
        %v339 = vmul.f32 %v336, 1.442695
        %v340 = vpow.pop %v339
        %v341 = vadd.f32 %v338, 1.0
        %v342 = vadd.f32 %v340, 1.0
        %v343 = vrcp.pop %v341
        %v344 = vmul.f32 1.0, %v343
        %v345 = vrcp.pop %v342
        %v346 = vmul.f32 1.0, %v345
        %v347 = vpack.c.bf16 %v346, %v344
        %v348 = vld [vmem:[%s3] sm:$0xf]
        %v349 = vld [vmem:[%s3 + $0x4] sm:$0xf]
        %v352 = vunpack.c.l.b16 %v348
        %v353 = vunpack.c.l.b16 %v349
        %v354 = vpack.c.b16 %v353, %v352
        %vm356 = vcmask 130048
        %v358 = vsel %vm356, %v347, 0
        %360 = vmatprep.subr.bf16.mxu0 0
        %361 = vmatpush1.bf16.msra.mxu0 %v354
        %362 = vmatprep.subr.bf16.mxu0 0
        %363 = vmatpush1.bf16.msra.mxu0 0
        %364 = vmatprep.subr.bf16.mxu0 0
        %365 = vmatpush1.bf16.msra.mxu0 0
        %366 = vmatprep.subr.bf16.mxu0 0
        %367 = vmatpush1.bf16.msra.mxu0 0
        %368 = vmatprep.subr.bf16.mxu0 0
        %369 = vmatpush1.bf16.msra.mxu0 0
        %370 = vmatprep.subr.bf16.mxu0 0
        %371 = vmatpush1.bf16.msra.mxu0 0
        %372 = vmatprep.subr.bf16.mxu0 0
        %373 = vmatpush1.bf16.msra.mxu0 0
        %374 = vmatprep.subr.bf16.mxu0 0
        %375 = vmatpush1.bf16.msra.mxu0 0
        %376 = vmatprep.subr.bf16.mxu0 0
        %377 = vmatpush1.bf16.msra.mxu0 0
        %378 = vmatprep.subr.bf16.mxu0 0
        %379 = vmatpush1.bf16.msra.mxu0 0
        %380 = vmatprep.subr.bf16.mxu0 0
        %381 = vmatpush1.bf16.msra.mxu0 0
        %382 = vmatprep.subr.bf16.mxu0 0
        %383 = vmatpush1.bf16.msra.mxu0 0
        %384 = vmatprep.subr.bf16.mxu0 0
        %385 = vmatpush1.bf16.msra.mxu0 0
        %386 = vmatprep.subr.bf16.mxu0 0
        %387 = vmatpush1.bf16.msra.mxu0 0
        %388 = vmatprep.subr.bf16.mxu0 0
        %389 = vmatpush1.bf16.msra.mxu0 0
        %390 = vmatprep.subr.bf16.mxu0 0
        %391 = vmatpush1.bf16.msra.mxu0 0
        %392 = vmatprep.mubr.bf16.mxu0 0
        %393 = vmatmul.mubr.bf16.gmra.mrb[0].mxu0 %v358
        %v394 = vpop.f32.mrb[0].mxu0
        %v395 = vadd.f32 0.0, %v394
        %v396 = vpop.f32.mrb[0].mxu0
        %v397 = vpop.f32.mrb[0].mxu0
        %v398 = vadd.f32 0.0, %v397
        %v399 = vpop.f32.mrb[0].mxu0
        %400 = vdwg.mxu0
        %v401 = vsub.f32 1.0, %v395
        %v402 = vsub.f32 1.0, %v398
        %v403 = vlaneseq
        %v404 = vand.u32 %v403, 127
        %vm405 = vcmp.lt.s32.totalorder %v404, 16
        %v406 = vsel %vm405, %v401, -inf
        %v407 = vsel %vm405, %v402, -inf
        %408 = vmax.xlane.f32.xlu0 %v406
        %v409 = vpop.xlane.xlu0 %408
        %410 = vmax.xlane.f32.xlu0 %v407
        %v411 = vpop.xlane.xlu0 %410
        %v412 = vsub.f32 %v406, %v409
        %v413 = vsub.f32 %v407, %v411
        %v414 = vmul.f32 %v412, 1.442695
        %v415 = vpow.pop %v414
        %v416 = vmul.f32 %v413, 1.442695
        %v417 = vpow.pop %v416
        %418 = vadd.xlane.f32.xlu0 %v415
        %v419 = vpop.xlane.xlu0 %418
        %420 = vadd.xlane.f32.xlu0 %v417
        %v421 = vpop.xlane.xlu0 %420
        %v422 = vrcp.pop %v419
        %v423 = vrcp.pop %v421
        %v424 = vmul.f32 %v415, %v422
        %v425 = vmul.f32 %v417, %v423
        %426 = vst [vmem:[%s215] sm:$0xff] %v424
        %427 = vst [vmem:[%s215 + $0x8] sm:$0xff] %v425
        %s428 = sand.u32 %s118, 1
        %s429 = scalar_lea.sflag [#allocation4], %s428
        %s430 = sand.u32 %s118, 1
        %s431 = smul.addr %s430, 16
        %s432 = scalar_lea.vmem [#allocation5], %s431
        // Predicated region
        $region41: #{tpu_custom_call.1} parent=35 // pred_check
          %p433 = pneg %p128
        $region42: #{tpu_custom_call.1} parent=35 // pred_check_branch
          %435 = sbr.rel (%p433) target = $region44
        $region43: #{tpu_custom_call.1} parent=35 // pred_region
          %s437 = ssub.s32 256, 256
          %438 = vsyncadd %s429, %s437
          %s439 = smul.addr %s21, 2
          %s440 = smul.addr %s439, 128
          %s441 = scalar_lea.hbm %s4, %s440
          %s442 = sshll.u32 %s432, 4
          %s443 = int_to_ptr.vmem [resolvable:$true] %s442
          %448 = dma.vmem_to_hbm [thread:$0]  %s443, 256, %s441, %s429, 128, 128, 8
        $region44: #{tpu_custom_call.1} parent=35 // pred_fallthru
          _
      $region36: #{tpu_custom_call.1} parent=5 // pred_fallthru
        _
      %p449 = scmp.le.s32.totalorder 2, %s16
      // Predicated region
      $region45: #{tpu_custom_call.1} parent=5 // pred_check
        %p450 = pneg %p449
      $region46: #{tpu_custom_call.1} parent=5 // pred_check_branch
        %452 = sbr.rel (%p450) target = $region48
      $region47: #{tpu_custom_call.1} parent=5 // pred_region
        %s453 = ssub.s32 %s16, 2
        // Predicated region
        $region49: #{tpu_custom_call.1} parent=47 // pred_check
          %p454 = pneg %p134
        $region50: #{tpu_custom_call.1} parent=47 // pred_check_branch
          %456 = sbr.rel (%p454) target = $region52
        $region51: #{tpu_custom_call.1} parent=47 // pred_region
          %s457 = sand.u32 %s119, 1
          %s458 = scalar_lea.sflag [#allocation4], %s457
          %s459 = sand.u32 %s119, 1
          %s460 = smul.addr %s459, 16
          %s461 = scalar_lea.vmem [#allocation5], %s460
          %462 = dma.done %s458, 256
        $region52: #{tpu_custom_call.1} parent=47 // pred_fallthru
          _
      $region48: #{tpu_custom_call.1} parent=5 // pred_fallthru
        _
    $region6: #{tpu_custom_call.1} parent=1 // loop_footer
      %s20 = sadd.s32 1, %s16
    $region7: #{tpu_custom_call.1} parent=1 // loop_footer_branch
      %15 = sbr.rel target = $region3
    $region8: #{tpu_custom_call.1} parent=1 // loop_exit
      _
    %463 = vsyncpa [#allocation3], 1
    %s464 = scalar_lea.sflag [#allocation3], 1
    %465 = vsyncpa %s464, 1
    %466 = vsyncpa [#allocation4], 1
    %s467 = scalar_lea.sflag [#allocation4], 1
    %468 = vsyncpa %s467, 1

</llo_original>
